<compile_context>
chip_gen: v5e
topology: v5e:2x2
jax: 0.10.0
libtpu: 0.0.40
codegen_flags: <defaults>
</compile_context>

<pallas_src>
import functools

import jax
import jax.numpy as jnp
from jax import lax
from jax.experimental import pallas as pl
from jax.experimental.pallas import tpu as pltpu


def _conv_bn_leaky_kernel(x_ref, w_ref, b_ref, col_ref, o_ref, xext_ref, p_ref, *,
                          H, W, KH, KW, Cin, L0, slope):
    """One grid step = one batch element (NCHW, spatial flattened on lanes).

    x_ref   : (1, Cin, H*W)          flattened input image (VMEM)
    w_ref   : (Cout, KH*KW*Cin)      conv weight with BN scale folded in (VMEM)
    b_ref   : (Cout, 1)              folded BN bias, f32 (VMEM)
    col_ref : (1, H*W)               int32 column index (o % W) per flattened pixel
    o_ref   : (1, Cout, H*W)         output tile, lane-dense last dim (VMEM)
    xext_ref: (Cin, L0 + H*W + S0)   zero-extended flat image scratch (VMEM)
    p_ref   : (KH*KW*Cin, H*W)       im2col patch matrix scratch (VMEM)
    """
    HW = H * W
    pad_h, pad_w = KH // 2, KW // 2

    # Zero-extend the flattened image so every conv tap becomes a static lane-slice.
    # The zero fill realizes the SAME padding for row-out-of-range positions.
    xext_ref[...] = jnp.zeros_like(xext_ref)
    xext_ref[:, L0:L0 + HW] = x_ref[0]

    col = col_ref[...]                                        # (1, HW) int32

    # im2col: p[(kh*KW + kw)*Cin + ci, o] =
    #         x_padded[ci, o // W + kh - pad_h, o % W + kw - pad_w]
    for kh in range(KH):
        dh = kh - pad_h
        for kw in range(KW):
            dw = kw - pad_w
            s = dh * W + dw                                   # flat shift of this tap
            tap = xext_ref[:, L0 + s:L0 + s + HW]             # (Cin, HW) zero-filled shift
            if dw > 0:
                tap = jnp.where(col < (W - dw), tap, jnp.zeros((), tap.dtype))
            elif dw < 0:
                tap = jnp.where(col >= (-dw), tap, jnp.zeros((), tap.dtype))
            t = kh * KW + kw
            p_ref[t * Cin:(t + 1) * Cin, :] = tap

    # Single fused MXU matmul over K = KH*KW*Cin (instead of KH*KW thin K=Cin dots).
    acc = jnp.dot(w_ref[...], p_ref[...],
                  preferred_element_type=jnp.float32)         # (Cout, HW) f32

    y = acc + b_ref[...]                                      # folded BN bias
    y = jnp.where(y >= 0, y, slope * y)                       # LeakyReLU
    o_ref[0] = y.astype(o_ref.dtype)


def conv2d_batch_leaky(x_nchw, weight, gamma, beta, running_mean, running_var, *,
                       stride=1, leaky_slope=0.1, eps=1e-5):
    """Forward pass matching PyTorch Conv2dBatchLeaky (eval-mode BN).

    x_nchw : (N, Cin, H, W)
    weight : (Cout, Cin, KH, KW)   -- PyTorch conv weight layout
    returns: (N, Cout, Ho, Wo)
    """
    N, Cin, H, W = x_nchw.shape
    Cout, Cin_w, KH, KW = weight.shape
    assert Cin_w == Cin
    if KH % 2 == 0 or KW % 2 == 0:
        # TODO(synk): even kernel sizes (padding=k//2 gives a different output size).
        raise NotImplementedError("even kernel sizes are not supported")

    HW = H * W
    S0 = (KH // 2) * W + (KW // 2)                 # max |flat shift| over taps
    L0 = ((S0 + 127) // 128) * 128 if S0 > 0 else 0  # lane-aligned base for the image

    # ---- fold eval-mode BatchNorm: scale into the weight, bias kept separate ----
    inv_std = 1.0 / jnp.sqrt(running_var.astype(jnp.float32) + eps)
    scale = gamma.astype(jnp.float32) * inv_std                         # (Cout,)
    bias = beta.astype(jnp.float32) - running_mean.astype(jnp.float32) * scale

    # (Cout, Cin, KH, KW) -> (Cout, KH*KW*Cin); row order (kh, kw, cin) matches the kernel.
    w_scaled = weight.astype(jnp.float32) * scale[:, None, None, None]
    w2 = jnp.transpose(w_scaled, (0, 2, 3, 1)).reshape(Cout, KH * KW * Cin)
    w2 = w2.astype(weight.dtype)                   # feed the MXU in the weight's native dtype

    x_flat = x_nchw.reshape(N, Cin, HW)            # contiguous collapse: no HBM copy
    bias2 = bias.reshape(Cout, 1)
    col = (jnp.arange(HW, dtype=jnp.int32) % W).reshape(1, HW)

    kernel = functools.partial(_conv_bn_leaky_kernel, H=H, W=W, KH=KH, KW=KW,
                               Cin=Cin, L0=L0, slope=leaky_slope)

    out_flat = pl.pallas_call(
        kernel,
        out_shape=jax.ShapeDtypeStruct((N, Cout, HW), x_nchw.dtype),
        grid_spec=pltpu.PrefetchScalarGridSpec(
            num_scalar_prefetch=0,
            grid=(N,),
            in_specs=[
                pl.BlockSpec((1, Cin, HW), lambda n: (n, 0, 0)),
                pl.BlockSpec((Cout, KH * KW * Cin), lambda n: (0, 0)),
                pl.BlockSpec((Cout, 1), lambda n: (0, 0)),
                pl.BlockSpec((1, HW), lambda n: (0, 0)),
            ],
            out_specs=pl.BlockSpec((1, Cout, HW), lambda n: (n, 0, 0)),
            scratch_shapes=[
                pltpu.VMEM((Cin, L0 + HW + S0), x_nchw.dtype),
                pltpu.VMEM((KH * KW * Cin, HW), x_nchw.dtype),
            ],
        ),
        compiler_params=pltpu.CompilerParams(
            dimension_semantics=("parallel",)),
    )(x_flat, w2, bias2, col)

    out = out_flat.reshape(N, Cout, H, W)          # free reshape back to NCHW
    if stride > 1:
        # Exact for odd kernels with padding=k//2: strided conv == stride-1 conv subsampled.
        # TODO(synk): a space-to-depth input restructuring would avoid the redundant
        #             stride-1 compute for stride>1 layers.
        out = out[:, :, ::stride, ::stride]
    return out


def _reference(x_nchw, weight, gamma, beta, running_mean, running_var,
               *, stride=1, leaky_slope=0.1, eps=1e-5):
    """Pure-JAX reference (lax conv) for correctness checking."""
    pad_h = weight.shape[2] // 2
    pad_w = weight.shape[3] // 2
    conv = lax.conv_general_dilated(
        x_nchw.astype(jnp.float32), weight.astype(jnp.float32),
        window_strides=(stride, stride),
        padding=((pad_h, pad_h), (pad_w, pad_w)),
        dimension_numbers=("NCHW", "OIHW", "NCHW"))
    inv_std = 1.0 / jnp.sqrt(running_var + eps)
    scale = (gamma * inv_std).reshape(1, -1, 1, 1)
    bias = (beta - running_mean * gamma * inv_std).reshape(1, -1, 1, 1)
    y = conv * scale + bias
    return jnp.where(y >= 0, y, leaky_slope * y)


if __name__ == "__main__":
    # Module config: Conv2dBatchLeaky(in_channels=4, out_channels=8, kernel_size=3, stride=1)
    in_channels, out_channels, kernel_size, stride, leaky_slope = 4, 8, 3, 1, 0.1

    key = jax.random.PRNGKey(0)
    kx, kw, kg, kb, km, kv = jax.random.split(key, 6)

    x = jax.random.normal(kx, (2, in_channels, 16, 16), dtype=jnp.float32)
    weight = 0.1 * jax.random.normal(
        kw, (out_channels, in_channels, kernel_size, kernel_size), dtype=jnp.float32)
    gamma = 1.0 + 0.1 * jax.random.normal(kg, (out_channels,), dtype=jnp.float32)
    beta = 0.1 * jax.random.normal(kb, (out_channels,), dtype=jnp.float32)
    running_mean = 0.1 * jax.random.normal(km, (out_channels,), dtype=jnp.float32)
    running_var = jnp.abs(1.0 + 0.1 * jax.random.normal(kv, (out_channels,), dtype=jnp.float32))

    out = conv2d_batch_leaky(x, weight, gamma, beta, running_mean, running_var,
                             stride=stride, leaky_slope=leaky_slope)
    out = jax.block_until_ready(out)

    ref = _reference(x, weight, gamma, beta, running_mean, running_var,
                     stride=stride, leaky_slope=leaky_slope)
    assert out.shape == (2, out_channels, 16, 16), out.shape
    assert jnp.allclose(out, ref, atol=1e-4, rtol=1e-4), "mismatch vs reference"

    print("KERNEL_OK")
</pallas_src>

<mosaic_0001>
module attributes {stable_mosaic.version = 11 : i64} {
  func.func @_conv_bn_leaky_kernel(%arg0: i32, %arg1: memref<1x4x256xf32, #tpu.memory_space<vmem>>, %arg2: memref<8x36xf32, #tpu.memory_space<vmem>>, %arg3: memref<8x1xf32, #tpu.memory_space<vmem>>, %arg4: memref<1x256xi32, #tpu.memory_space<vmem>>, %arg5: memref<1x8x256xf32, #tpu.memory_space<vmem>>, %arg6: memref<4x401xf32, #tpu.memory_space<vmem>>, %arg7: memref<36x256xf32, #tpu.memory_space<vmem>>) attributes {dimension_semantics = [#tpu.dimension_semantics<parallel>], iteration_bounds = array<i64: 2>, scalar_prefetch = 0 : i64, scratch_operands = 2 : i64, tpu.core_type = #tpu.core_type<tc>, window_params = [{transform_indices = @transform_0, window_bounds = array<i64: 1, 4, 256>}, {pipeline_mode = #tpu.pipeline_mode<synchronous>, transform_indices = @transform_1, window_bounds = array<i64: 8, 36>}, {pipeline_mode = #tpu.pipeline_mode<synchronous>, transform_indices = @transform_2, window_bounds = array<i64: 8, 1>}, {pipeline_mode = #tpu.pipeline_mode<synchronous>, transform_indices = @transform_3, window_bounds = array<i64: 1, 256>}, {transform_indices = @transform_4, window_bounds = array<i64: 1, 8, 256>}]} {
    %cst = arith.constant 0.000000e+00 : f32
    %0 = vector.broadcast %cst : f32 to vector<4x401xf32>
    %c0 = arith.constant 0 : index
    %c0_0 = arith.constant 0 : index
    %1 = vector.load %arg6[%c0, %c0_0] : memref<4x401xf32, #tpu.memory_space<vmem>>, vector<4x401xf32>
    tpu.vector_store %arg6[%c0, %c0_0], %0 {strides = array<i32>} : memref<4x401xf32, #tpu.memory_space<vmem>>, vector<4x401xf32>,
    %c0_1 = arith.constant 0 : index
    %c0_2 = arith.constant 0 : index
    %c0_3 = arith.constant 0 : index
    %2 = vector.load %arg1[%c0_1, %c0_2, %c0_3] : memref<1x4x256xf32, #tpu.memory_space<vmem>>, vector<1x4x256xf32>
    %3 = vector.shape_cast %2 : vector<1x4x256xf32> to vector<4x256xf32>
    %c0_4 = arith.constant 0 : index
    %c128 = arith.constant 128 : index
    %4 = vector.load %arg6[%c0_4, %c128] : memref<4x401xf32, #tpu.memory_space<vmem>>, vector<4x256xf32>
    tpu.vector_store %arg6[%c0_4, %c128], %3 {strides = array<i32>} : memref<4x401xf32, #tpu.memory_space<vmem>>, vector<4x256xf32>,
    %c0_5 = arith.constant 0 : index
    %c0_6 = arith.constant 0 : index
    %5 = vector.load %arg4[%c0_5, %c0_6] : memref<1x256xi32, #tpu.memory_space<vmem>>, vector<1x256xi32>
    %c0_7 = arith.constant 0 : index
    %c111 = arith.constant 111 : index
    %6 = vector.load %arg6[%c0_7, %c111] : memref<4x401xf32, #tpu.memory_space<vmem>>, vector<4x256xf32>
    %c1_i32 = arith.constant 1 : i32
    %7 = vector.broadcast %c1_i32 : i32 to vector<1x256xi32>
    %8 = arith.cmpi sge, %5, %7 : vector<1x256xi32>
    %cst_8 = arith.constant 0.000000e+00 : f32
    %9 = vector.shape_cast %8 : vector<1x256xi1> to vector<1x256xi1>
    %10 = vector.broadcast %9 : vector<1x256xi1> to vector<4x256xi1>
    %11 = vector.broadcast %cst_8 : f32 to vector<4x256xf32>
    %12 = arith.select %10, %6, %11 : vector<4x256xi1>, vector<4x256xf32>
    %c0_9 = arith.constant 0 : index
    %c0_10 = arith.constant 0 : index
    %13 = vector.load %arg7[%c0_9, %c0_10] : memref<36x256xf32, #tpu.memory_space<vmem>>, vector<4x256xf32>
    tpu.vector_store %arg7[%c0_9, %c0_10], %12 {strides = array<i32>} : memref<36x256xf32, #tpu.memory_space<vmem>>, vector<4x256xf32>,
    %c0_11 = arith.constant 0 : index
    %c112 = arith.constant 112 : index
    %14 = vector.load %arg6[%c0_11, %c112] : memref<4x401xf32, #tpu.memory_space<vmem>>, vector<4x256xf32>
    %c4 = arith.constant 4 : index
    %c0_12 = arith.constant 0 : index
    %15 = vector.load %arg7[%c4, %c0_12] : memref<36x256xf32, #tpu.memory_space<vmem>>, vector<4x256xf32>
    tpu.vector_store %arg7[%c4, %c0_12], %14 {strides = array<i32>} : memref<36x256xf32, #tpu.memory_space<vmem>>, vector<4x256xf32>,
    %c0_13 = arith.constant 0 : index
    %c113 = arith.constant 113 : index
    %16 = vector.load %arg6[%c0_13, %c113] : memref<4x401xf32, #tpu.memory_space<vmem>>, vector<4x256xf32>
    %c15_i32 = arith.constant 15 : i32
    %17 = vector.broadcast %c15_i32 : i32 to vector<1x256xi32>
    %18 = arith.cmpi slt, %5, %17 : vector<1x256xi32>
    %cst_14 = arith.constant 0.000000e+00 : f32
    %19 = vector.shape_cast %18 : vector<1x256xi1> to vector<1x256xi1>
    %20 = vector.broadcast %19 : vector<1x256xi1> to vector<4x256xi1>
    %21 = vector.broadcast %cst_14 : f32 to vector<4x256xf32>
    %22 = arith.select %20, %16, %21 : vector<4x256xi1>, vector<4x256xf32>
    %c8 = arith.constant 8 : index
    %c0_15 = arith.constant 0 : index
    %23 = vector.load %arg7[%c8, %c0_15] : memref<36x256xf32, #tpu.memory_space<vmem>>, vector<4x256xf32>
    tpu.vector_store %arg7[%c8, %c0_15], %22 {strides = array<i32>} : memref<36x256xf32, #tpu.memory_space<vmem>>, vector<4x256xf32>,
    %c0_16 = arith.constant 0 : index
    %c127 = arith.constant 127 : index
    %24 = vector.load %arg6[%c0_16, %c127] : memref<4x401xf32, #tpu.memory_space<vmem>>, vector<4x256xf32>
    %c1_i32_17 = arith.constant 1 : i32
    %25 = vector.broadcast %c1_i32_17 : i32 to vector<1x256xi32>
    %26 = arith.cmpi sge, %5, %25 : vector<1x256xi32>
    %cst_18 = arith.constant 0.000000e+00 : f32
    %27 = vector.shape_cast %26 : vector<1x256xi1> to vector<1x256xi1>
    %28 = vector.broadcast %27 : vector<1x256xi1> to vector<4x256xi1>
    %29 = vector.broadcast %cst_18 : f32 to vector<4x256xf32>
    %30 = arith.select %28, %24, %29 : vector<4x256xi1>, vector<4x256xf32>
    %c12 = arith.constant 12 : index
    %c0_19 = arith.constant 0 : index
    %31 = vector.load %arg7[%c12, %c0_19] : memref<36x256xf32, #tpu.memory_space<vmem>>, vector<4x256xf32>
    tpu.vector_store %arg7[%c12, %c0_19], %30 {strides = array<i32>} : memref<36x256xf32, #tpu.memory_space<vmem>>, vector<4x256xf32>,
    %c0_20 = arith.constant 0 : index
    %c128_21 = arith.constant 128 : index
    %32 = vector.load %arg6[%c0_20, %c128_21] : memref<4x401xf32, #tpu.memory_space<vmem>>, vector<4x256xf32>
    %c16 = arith.constant 16 : index
    %c0_22 = arith.constant 0 : index
    %33 = vector.load %arg7[%c16, %c0_22] : memref<36x256xf32, #tpu.memory_space<vmem>>, vector<4x256xf32>
    tpu.vector_store %arg7[%c16, %c0_22], %32 {strides = array<i32>} : memref<36x256xf32, #tpu.memory_space<vmem>>, vector<4x256xf32>,
    %c0_23 = arith.constant 0 : index
    %c129 = arith.constant 129 : index
    %34 = vector.load %arg6[%c0_23, %c129] : memref<4x401xf32, #tpu.memory_space<vmem>>, vector<4x256xf32>
    %c15_i32_24 = arith.constant 15 : i32
    %35 = vector.broadcast %c15_i32_24 : i32 to vector<1x256xi32>
    %36 = arith.cmpi slt, %5, %35 : vector<1x256xi32>
    %cst_25 = arith.constant 0.000000e+00 : f32
    %37 = vector.shape_cast %36 : vector<1x256xi1> to vector<1x256xi1>
    %38 = vector.broadcast %37 : vector<1x256xi1> to vector<4x256xi1>
    %39 = vector.broadcast %cst_25 : f32 to vector<4x256xf32>
    %40 = arith.select %38, %34, %39 : vector<4x256xi1>, vector<4x256xf32>
    %c20 = arith.constant 20 : index
    %c0_26 = arith.constant 0 : index
    %41 = vector.load %arg7[%c20, %c0_26] : memref<36x256xf32, #tpu.memory_space<vmem>>, vector<4x256xf32>
    tpu.vector_store %arg7[%c20, %c0_26], %40 {strides = array<i32>} : memref<36x256xf32, #tpu.memory_space<vmem>>, vector<4x256xf32>,
    %c0_27 = arith.constant 0 : index
    %c143 = arith.constant 143 : index
    %42 = vector.load %arg6[%c0_27, %c143] : memref<4x401xf32, #tpu.memory_space<vmem>>, vector<4x256xf32>
    %c1_i32_28 = arith.constant 1 : i32
    %43 = vector.broadcast %c1_i32_28 : i32 to vector<1x256xi32>
    %44 = arith.cmpi sge, %5, %43 : vector<1x256xi32>
    %cst_29 = arith.constant 0.000000e+00 : f32
    %45 = vector.shape_cast %44 : vector<1x256xi1> to vector<1x256xi1>
    %46 = vector.broadcast %45 : vector<1x256xi1> to vector<4x256xi1>
    %47 = vector.broadcast %cst_29 : f32 to vector<4x256xf32>
    %48 = arith.select %46, %42, %47 : vector<4x256xi1>, vector<4x256xf32>
    %c24 = arith.constant 24 : index
    %c0_30 = arith.constant 0 : index
    %49 = vector.load %arg7[%c24, %c0_30] : memref<36x256xf32, #tpu.memory_space<vmem>>, vector<4x256xf32>
    tpu.vector_store %arg7[%c24, %c0_30], %48 {strides = array<i32>} : memref<36x256xf32, #tpu.memory_space<vmem>>, vector<4x256xf32>,
    %c0_31 = arith.constant 0 : index
    %c144 = arith.constant 144 : index
    %50 = vector.load %arg6[%c0_31, %c144] : memref<4x401xf32, #tpu.memory_space<vmem>>, vector<4x256xf32>
    %c28 = arith.constant 28 : index
    %c0_32 = arith.constant 0 : index
    %51 = vector.load %arg7[%c28, %c0_32] : memref<36x256xf32, #tpu.memory_space<vmem>>, vector<4x256xf32>
    tpu.vector_store %arg7[%c28, %c0_32], %50 {strides = array<i32>} : memref<36x256xf32, #tpu.memory_space<vmem>>, vector<4x256xf32>,
    %c0_33 = arith.constant 0 : index
    %c145 = arith.constant 145 : index
    %52 = vector.load %arg6[%c0_33, %c145] : memref<4x401xf32, #tpu.memory_space<vmem>>, vector<4x256xf32>
    %c15_i32_34 = arith.constant 15 : i32
    %53 = vector.broadcast %c15_i32_34 : i32 to vector<1x256xi32>
    %54 = arith.cmpi slt, %5, %53 : vector<1x256xi32>
    %cst_35 = arith.constant 0.000000e+00 : f32
    %55 = vector.shape_cast %54 : vector<1x256xi1> to vector<1x256xi1>
    %56 = vector.broadcast %55 : vector<1x256xi1> to vector<4x256xi1>
    %57 = vector.broadcast %cst_35 : f32 to vector<4x256xf32>
    %58 = arith.select %56, %52, %57 : vector<4x256xi1>, vector<4x256xf32>
    %c32 = arith.constant 32 : index
    %c0_36 = arith.constant 0 : index
    %59 = vector.load %arg7[%c32, %c0_36] : memref<36x256xf32, #tpu.memory_space<vmem>>, vector<4x256xf32>
    tpu.vector_store %arg7[%c32, %c0_36], %58 {strides = array<i32>} : memref<36x256xf32, #tpu.memory_space<vmem>>, vector<4x256xf32>,
    %c0_37 = arith.constant 0 : index
    %c0_38 = arith.constant 0 : index
    %60 = vector.load %arg2[%c0_37, %c0_38] : memref<8x36xf32, #tpu.memory_space<vmem>>, vector<8x36xf32>
    %c0_39 = arith.constant 0 : index
    %c0_40 = arith.constant 0 : index
    %61 = vector.load %arg7[%c0_39, %c0_40] : memref<36x256xf32, #tpu.memory_space<vmem>>, vector<36x256xf32>
    %cst_41 = arith.constant dense<0.000000e+00> : vector<8x256xf32>
    %62 = tpu.matmul %60, %61, %cst_41 {dimension_numbers = #tpu.dot_dimension_numbers<[1], [0], [0], [1], [0, 0, 1, 1], [], []>} : vector<8x36xf32>, vector<36x256xf32>, vector<8x256xf32> -> vector<8x256xf32>
    %c0_42 = arith.constant 0 : index
    %c0_43 = arith.constant 0 : index
    %63 = vector.load %arg3[%c0_42, %c0_43] : memref<8x1xf32, #tpu.memory_space<vmem>>, vector<8x1xf32>
    %64 = vector.broadcast %63 : vector<8x1xf32> to vector<8x256xf32>
    %65 = arith.addf %62, %64 : vector<8x256xf32>
    %cst_44 = arith.constant 0.000000e+00 : f32
    %66 = vector.broadcast %cst_44 : f32 to vector<8x256xf32>
    %67 = arith.cmpf oge, %65, %66 : vector<8x256xf32>
    %cst_45 = arith.constant 1.000000e-01 : f32
    %68 = vector.broadcast %cst_45 : f32 to vector<8x256xf32>
    %69 = arith.mulf %68, %65 : vector<8x256xf32>
    %70 = arith.select %67, %65, %69 : vector<8x256xi1>, vector<8x256xf32>
    %c0_46 = arith.constant 0 : index
    %c0_47 = arith.constant 0 : index
    %c0_48 = arith.constant 0 : index
    %71 = vector.load %arg5[%c0_46, %c0_47, %c0_48] : memref<1x8x256xf32, #tpu.memory_space<vmem>>, vector<1x8x256xf32>
    %72 = vector.shape_cast %71 : vector<1x8x256xf32> to vector<8x256xf32>
    %73 = vector.shape_cast %70 : vector<8x256xf32> to vector<1x8x256xf32>
    tpu.vector_store %arg5[%c0_46, %c0_47, %c0_48], %73 {strides = array<i32>} : memref<1x8x256xf32, #tpu.memory_space<vmem>>, vector<1x8x256xf32>,
    return
  }
  func.func @transform_0(%arg0: i32) -> (i32, i32, i32) {
    %c0_i32 = arith.constant 0 : i32
    %c0_i32_0 = arith.constant 0 : i32
    %c0_i32_1 = arith.constant 0 : i32
    return %arg0, %c0_i32, %c0_i32_0 : i32, i32, i32
  }
  func.func @transform_1(%arg0: i32) -> (i32, i32) {
    %c0_i32 = arith.constant 0 : i32
    %c0_i32_0 = arith.constant 0 : i32
    %c0_i32_1 = arith.constant 0 : i32
    return %c0_i32, %c0_i32_0 : i32, i32
  }
  func.func @transform_2(%arg0: i32) -> (i32, i32) {
    %c0_i32 = arith.constant 0 : i32
    %c0_i32_0 = arith.constant 0 : i32
    %c0_i32_1 = arith.constant 0 : i32
    return %c0_i32, %c0_i32_0 : i32, i32
  }
  func.func @transform_3(%arg0: i32) -> (i32, i32) {
    %c0_i32 = arith.constant 0 : i32
    %c0_i32_0 = arith.constant 0 : i32
    %c0_i32_1 = arith.constant 0 : i32
    return %c0_i32, %c0_i32_0 : i32, i32
  }
  func.func @transform_4(%arg0: i32) -> (i32, i32, i32) {
    %c0_i32 = arith.constant 0 : i32
    %c0_i32_0 = arith.constant 0 : i32
    %c0_i32_1 = arith.constant 0 : i32
    return %arg0, %c0_i32, %c0_i32_0 : i32, i32, i32
  }
}

</mosaic_0001>

<llo_original>
// kernel: tpu_custom_call.1
$region0: #{tpu_custom_call.1}
  #allocation0 [shape = 'u32[]', space=smem, size = 0x4, offset = 0x4, fixed_abs, tag = 'smem constant byte address 0x4 - core index']
  #allocation1 [shape = 'u32[72,128]{1,0:T(1,128)}', space=vmem, size = 0x9000, scoped, tag = 'internal scratch']
  #allocation2 [shape = 'f32[4,401]{1,0:T(4,128)}', space=vmem, size = 0x2000, scoped, tag = 'scratch operand']
  #allocation3 [shape = 'f32[36,256]{1,0:T(8,128)}', space=vmem, size = 0xa000, scoped, tag = 'scratch operand']
  %s0 = inlined_call_operand.hbm [shape: f32[2,4,256], index: 0, kind: input, shape index: {}]
  %s1 = inlined_call_operand.vmem [shape: f32[8,36], index: 1, kind: input, shape index: {}]
  %s2 = inlined_call_operand.vmem [shape: f32[8,1], index: 2, kind: input, shape index: {}]
  %s3 = inlined_call_operand.hbm [shape: s32[1,256], index: 3, kind: input, shape index: {}]
  %s4 = inlined_call_operand.hbm [shape: f32[2,8,256], index: 4, kind: output, shape index: {}]
  %s5 = sld [smem:[#allocation0]]
  $region57: #{tpu_custom_call.1} parent=0
    _
  %s7 = ssub.s32 1, %s5
  %s8 = scalar_select 0, %s7, %s5
  $region1: #{tpu_custom_call.1} parent=0
    #allocation4 [shape = 'u8[8192]{0}', space=vmem, size = 0x2000, scoped, tag = 'input window, operand 0']
    #allocation5 [shape = 's32[2]{0}', space=sflag, size = 0x8, scoped, tag = 'scoped memory for tpu_custom_call.1']
    #allocation6 [shape = 's32[2]{0}', space=sflag, size = 0x8, scoped, tag = 'scoped memory for tpu_custom_call.1']
    #allocation7 [shape = 'u8[1024]{0}', space=vmem, size = 0x400, scoped, tag = 'input window, operand 3, single buffered']
    #allocation8 [shape = 's32[1]{0}', space=sflag, size = 0x4, scoped, tag = 'scoped memory for tpu_custom_call.1']
    #allocation9 [shape = 'u8[16384]{0}', space=vmem, size = 0x4000, scoped, tag = 'output window, operand 0']
    %9 = vsyncpa [#allocation5], 0
    %s10 = scalar_lea.sflag [#allocation5], 1
    %11 = vsyncpa %s10, 0
    %12 = vsyncpa [#allocation8], 0
    %13 = vsyncpa [#allocation6], 0
    %s14 = scalar_lea.sflag [#allocation6], 1
    %15 = vsyncpa %s14, 0
    loop: start=0, step=1, limit=4
    $region2: #{tpu_custom_call.1} parent=1 // loop_pre_header
      _
    $region3: #{tpu_custom_call.1} parent=1 // loop_header
      %s17 = sphi 0, %s21
      %p18 = scmp.ge.s32.totalorder %s17, 4
      %s27 = sphi 0, %s29
      %s30 = sphi 0, %s27
      %s31 = sphi 0, %s30
      %s47 = sphi 0, %s31
      %s51 = sphi 0, %s51
      %s53 = sphi 0, %s51
      %s54 = sphi 0, %s53
      %s68 = sphi 0, %s54
      %s72 = sphi 0, %s72
      %s74 = sphi 0, %s72
      %s75 = sphi 0, %s74
      %s89 = sphi 0, %s75
      %s93 = sphi 0, %s93
      %s95 = sphi 0, %s93
      %s96 = sphi 0, %s95
      %s110 = sphi 0, %s96
      %s116 = sphi 0, %s118
      %s119 = sphi 0, %s116
      %s120 = sphi 0, %s119
      %s136 = sphi 0, %s120
    $region4: #{tpu_custom_call.1} parent=1 // loop_header_branch
      %20 = sbr.rel (%p18) target = $region8
    $region5: #{tpu_custom_call.1} parent=1 // loop_body
      %s22 = ssub.s32 %s17, 1
      %s23 = ssub.s32 %s17, 2
      %s24 = sadd.s32 %s17, 1
      %s25 = ssub.s32 %s17, %s24
      %p26 = scmp.eq.s32.totalorder %s25, 0
      %s28 = sadd.s32 %s27, 1
      %s29 = scalar_select %p26, %s27, %s28
      %p32 = pneg %p26
      %p33 = scmp.eq.s32.totalorder %s17, 1
      %p34 = por %p32, %p33
      %p35 = scmp.ne.s32.totalorder %s27, %s30
      %p36 = scmp.eq.s32.totalorder %s17, 0
      %p37 = por %p35, %p36
      %p38 = scmp.ne.s32.totalorder %s27, %s30
      %p39 = scmp.eq.s32.totalorder %s22, 1
      %p40 = por %p38, %p39
      %p41 = scmp.ne.s32.totalorder %s30, %s31
      %p42 = scmp.eq.s32.totalorder %s22, 0
      %p43 = por %p41, %p42
      %p44 = scmp.ne.s32.totalorder %s30, %s31
      %p45 = scmp.eq.s32.totalorder %s23, 1
      %p46 = por %p44, %p45
      %p48 = scmp.ne.s32.totalorder %s31, %s47
      %p49 = scmp.eq.s32.totalorder %s23, 0
      %p50 = por %p48, %p49
      %s52 = sadd.s32 %s51, 1
      %p55 = scmp.eq.s32.totalorder %s17, 1
      %p56 = scmp.ne.s32.totalorder %s51, %s53
      %p57 = scmp.eq.s32.totalorder %s17, 0
      %p58 = por %p56, %p57
      %p59 = scmp.ne.s32.totalorder %s51, %s53
      %p60 = scmp.eq.s32.totalorder %s22, 1
      %p61 = por %p59, %p60
      %p62 = scmp.ne.s32.totalorder %s53, %s54
      %p63 = scmp.eq.s32.totalorder %s22, 0
      %p64 = por %p62, %p63
      %p65 = scmp.ne.s32.totalorder %s53, %s54
      %p66 = scmp.eq.s32.totalorder %s23, 1
      %p67 = por %p65, %p66
      %p69 = scmp.ne.s32.totalorder %s54, %s68
      %p70 = scmp.eq.s32.totalorder %s23, 0
      %p71 = por %p69, %p70
      %s73 = sadd.s32 %s72, 1
      %p76 = scmp.eq.s32.totalorder %s17, 1
      %p77 = scmp.ne.s32.totalorder %s72, %s74
      %p78 = scmp.eq.s32.totalorder %s17, 0
      %p79 = por %p77, %p78
      %p80 = scmp.ne.s32.totalorder %s72, %s74
      %p81 = scmp.eq.s32.totalorder %s22, 1
      %p82 = por %p80, %p81
      %p83 = scmp.ne.s32.totalorder %s74, %s75
      %p84 = scmp.eq.s32.totalorder %s22, 0
      %p85 = por %p83, %p84
      %p86 = scmp.ne.s32.totalorder %s74, %s75
      %p87 = scmp.eq.s32.totalorder %s23, 1
      %p88 = por %p86, %p87
      %p90 = scmp.ne.s32.totalorder %s75, %s89
      %p91 = scmp.eq.s32.totalorder %s23, 0
      %p92 = por %p90, %p91
      %s94 = sadd.s32 %s93, 1
      %p97 = scmp.eq.s32.totalorder %s17, 1
      %p98 = scmp.ne.s32.totalorder %s93, %s95
      %p99 = scmp.eq.s32.totalorder %s17, 0
      %p100 = por %p98, %p99
      %p101 = scmp.ne.s32.totalorder %s93, %s95
      %p102 = scmp.eq.s32.totalorder %s22, 1
      %p103 = por %p101, %p102
      %p104 = scmp.ne.s32.totalorder %s95, %s96
      %p105 = scmp.eq.s32.totalorder %s22, 0
      %p106 = por %p104, %p105
      %p107 = scmp.ne.s32.totalorder %s95, %s96
      %p108 = scmp.eq.s32.totalorder %s23, 1
      %p109 = por %p107, %p108
      %p111 = scmp.ne.s32.totalorder %s96, %s110
      %p112 = scmp.eq.s32.totalorder %s23, 0
      %p113 = por %p111, %p112
      %s114 = ssub.s32 %s17, %s24
      %p115 = scmp.eq.s32.totalorder %s114, 0
      %s117 = sadd.s32 %s116, 1
      %s118 = scalar_select %p115, %s116, %s117
      %p121 = pneg %p115
      %p122 = scmp.eq.s32.totalorder %s17, 1
      %p123 = por %p121, %p122
      %p124 = scmp.ne.s32.totalorder %s116, %s119
      %p125 = scmp.eq.s32.totalorder %s17, 0
      %p126 = por %p124, %p125
      %p127 = scmp.ne.s32.totalorder %s116, %s119
      %p128 = scmp.eq.s32.totalorder %s22, 1
      %p129 = por %p127, %p128
      %p130 = scmp.ne.s32.totalorder %s119, %s120
      %p131 = scmp.eq.s32.totalorder %s22, 0
      %p132 = por %p130, %p131
      %p133 = scmp.ne.s32.totalorder %s119, %s120
      %p134 = scmp.eq.s32.totalorder %s23, 1
      %p135 = por %p133, %p134
      %p137 = scmp.ne.s32.totalorder %s120, %s136
      %p138 = scmp.eq.s32.totalorder %s23, 0
      %p139 = por %p137, %p138
      %p140 = scmp.le.s32.totalorder 1, %s17
      %p141 = scmp.lt.s32.totalorder %s17, 3
      %p142 = pnand %p140, %p141
      %p143 = pneg %p142
      // Predicated region
      $region9: #{tpu_custom_call.1} parent=5 // pred_check
        _
      $region10: #{tpu_custom_call.1} parent=5 // pred_check_branch
        %145 = sbr.rel (%p142) target = $region12
      $region11: #{tpu_custom_call.1} parent=5 // pred_region
        %s146 = ssub.s32 %s17, 1
        // Predicated region
        $region13: #{tpu_custom_call.1} parent=11 // pred_check
          %p147 = pneg %p64
        $region14: #{tpu_custom_call.1} parent=11 // pred_check_branch
          %149 = sbr.rel (%p147) target = $region16
        $region15: #{tpu_custom_call.1} parent=11 // pred_region
          _
        $region16: #{tpu_custom_call.1} parent=11 // pred_fallthru
          _
        // Predicated region
        $region17: #{tpu_custom_call.1} parent=11 // pred_check
          %p150 = pneg %p85
        $region18: #{tpu_custom_call.1} parent=11 // pred_check_branch
          %152 = sbr.rel (%p150) target = $region20
        $region19: #{tpu_custom_call.1} parent=11 // pred_region
          _
        $region20: #{tpu_custom_call.1} parent=11 // pred_fallthru
          _
        // Predicated region
        $region21: #{tpu_custom_call.1} parent=11 // pred_check
          %p153 = pneg %p106
        $region22: #{tpu_custom_call.1} parent=11 // pred_check_branch
          %155 = sbr.rel (%p153) target = $region24
        $region23: #{tpu_custom_call.1} parent=11 // pred_region
          %157 = vsyncadd [#allocation8], 0
          %s159 = sshll.u32 %s3, 4
          %s160 = int_to_ptr.hbm [resolvable:$true] %s159
          %s161 = sshll.u32 [#allocation7], 4
          %s162 = int_to_ptr.vmem [resolvable:$true] %s161
          %164 = dma.hbm_to_vmem [thread:$0]  %s160, 32, %s162, [#allocation8]
        $region24: #{tpu_custom_call.1} parent=11 // pred_fallthru
          _
      $region12: #{tpu_custom_call.1} parent=5 // pred_fallthru
        _
      %p165 = scmp.lt.s32.totalorder %s17, 2
      // Predicated region
      $region25: #{tpu_custom_call.1} parent=5 // pred_check
        %p166 = pneg %p165
      $region26: #{tpu_custom_call.1} parent=5 // pred_check_branch
        %168 = sbr.rel (%p166) target = $region28
      $region27: #{tpu_custom_call.1} parent=5 // pred_region
        // Predicated region
        $region29: #{tpu_custom_call.1} parent=27 // pred_check
          %p169 = pneg %p37
        $region30: #{tpu_custom_call.1} parent=27 // pred_check_branch
          %171 = sbr.rel (%p169) target = $region32
        $region31: #{tpu_custom_call.1} parent=27 // pred_region
          %s172 = sand.u32 %s27, 1
          %s173 = scalar_lea.sflag [#allocation5], %s172
          %s174 = sand.u32 %s27, 1
          %s175 = smul.addr %s174, 8
          %s176 = scalar_lea.vmem [#allocation4], %s175
          %178 = vsyncadd %s173, 0
          %s179 = smul.addr %s17, 2
          %s180 = smul.addr %s179, 4
          %s181 = scalar_lea.hbm %s0, %s180
          %s183 = sshll.u32 %s181, 4
          %s184 = int_to_ptr.hbm [resolvable:$true] %s183
          %s185 = sshll.u32 %s176, 4
          %s186 = int_to_ptr.vmem [resolvable:$true] %s185
          %188 = dma.hbm_to_vmem [thread:$0]  %s184, 128, %s186, %s173
        $region32: #{tpu_custom_call.1} parent=27 // pred_fallthru
          _
      $region28: #{tpu_custom_call.1} parent=5 // pred_fallthru
        _
      %p189 = scmp.le.s32.totalorder 1, %s17
      %p190 = scmp.lt.s32.totalorder %s17, 3
      %p191 = pnand %p189, %p190
      %p192 = pneg %p191
      // Predicated region
      $region33: #{tpu_custom_call.1} parent=5 // pred_check
        _
      $region34: #{tpu_custom_call.1} parent=5 // pred_check_branch
        %194 = sbr.rel (%p191) target = $region36
      $region35: #{tpu_custom_call.1} parent=5 // pred_region
        %s195 = ssub.s32 %s17, 1
        %s196 = sand.u32 %s30, 1
        %s197 = scalar_lea.sflag [#allocation5], %s196
        %s198 = sand.u32 %s30, 1
        %s199 = smul.addr %s198, 8
        %s200 = scalar_lea.vmem [#allocation4], %s199
        // Predicated region
        $region37: #{tpu_custom_call.1} parent=35 // pred_check
          %p201 = pneg %p43
        $region38: #{tpu_custom_call.1} parent=35 // pred_check_branch
          %203 = sbr.rel (%p201) target = $region40
        $region39: #{tpu_custom_call.1} parent=35 // pred_region
          %205 = dma.done %s197, 128
        $region40: #{tpu_custom_call.1} parent=35 // pred_fallthru
          _
        // Predicated region
        $region41: #{tpu_custom_call.1} parent=35 // pred_check
          %p206 = pneg %p106
        $region42: #{tpu_custom_call.1} parent=35 // pred_check_branch
          %208 = sbr.rel (%p206) target = $region44
        $region43: #{tpu_custom_call.1} parent=35 // pred_region
          %210 = dma.done [#allocation8], 32
        $region44: #{tpu_custom_call.1} parent=35 // pred_fallthru
          _
        %s211 = sand.u32 %s30, 1
        %s212 = scalar_lea.sflag [#allocation5], %s211
        %s213 = sand.u32 %s30, 1
        %s214 = smul.addr %s213, 8
        %s215 = scalar_lea.vmem [#allocation4], %s214
        %p216 = pneg %p43
        %p217 = pneg %p40
        %p218 = pneg %p64
        %p219 = pneg %p61
        %p220 = pneg %p85
        %p221 = pneg %p82
        %p222 = pneg %p106
        %p223 = pneg %p103
        %p224 = pneg %p132
        %p225 = pneg %p129
        %s226 = sand.u32 %s119, 1
        %s227 = scalar_lea.sflag [#allocation6], %s226
        %s228 = sand.u32 %s119, 1
        %s229 = smul.addr %s228, 16
        %s230 = scalar_lea.vmem [#allocation9], %s229
        %231 = vst [vmem:[#allocation2] sm:$0xff] 0.0
        %vm232 = vcmask 1043456
        %vm233 = vcmask 138244
        %vm234 = vmor %vm233, %vm232
        %235 = vst.msk [vmem:[#allocation2 + $0x8] sm:$0xff] %vm234, 0.0
        %v236 = vld [vmem:[%s200] sm:$0xff]
        %237 = vst [vmem:[#allocation2 + $0x4] sm:$0xff] %v236
        %v238 = vld [vmem:[#allocation7] sm:$0x3]
        %v239 = vld [vmem:[#allocation2] sm:$0xff]
        %v240 = vld [vmem:[#allocation2 + $0x8] sm:$0xf]
        %vm241 = vcmp.ge.s32.totalorder %v238, 1
        %v242 = vsel %vm241, 1, 0
        %v243 = vperm.slane %v242, 0
        %v244 = vperm.slane %v242, 1
        %vm245 = vcmp.eq.s32.totalorder %v243, 1
        %vm246 = vcmp.eq.s32.totalorder %v244, 1
        %249 = vst [vmem:[#allocation1] ss:$2 sm:$0xff] %v239
        %s250 = scalar_lea.vmem [#allocation1], 16
        %251 = vst [vmem:[%s250] ss:$2 sm:$0xff] %v240
        %v252 = vld.sshfl [vmem:[#allocation1] sm:$0xff pattern:$0x75316420]
        %v253 = vld.sshfl [vmem:[#allocation1 + $0x8] sm:$0xff pattern:$0x75316420]
        %v254 = vld.sshfl [vmem:[#allocation1 + $0x10] sm:$0xff pattern:$0x75316420]
        %255 = vrot.lane.b32.xlu0 %v252, 17
        %v256 = vpop.permute.xlu0 %255
        %257 = vrot.lane.b32.xlu0 %v253, 17
        %v258 = vpop.permute.xlu0 %257
        %259 = vrot.lane.b32.xlu0 %v254, 17
        %v260 = vpop.permute.xlu0 %259
        %vm261 = vcmask 138240
        %v262 = vsel %vm261, %v256, %v258
        %v263 = vsel %vm261, %v258, %v260
        %v266 = vsel %vm245, %v262, 0.0
        %v267 = vsel %vm246, %v263, 0.0
        %268 = vst [vmem:[#allocation3] sm:$0xf] %v266
        %269 = vst [vmem:[#allocation3 + $0x8] sm:$0xf] %v267
        %v270 = vld [vmem:[#allocation2] sm:$0xff]
        %v271 = vld [vmem:[#allocation2 + $0x8] sm:$0xf]
        %s274 = scalar_lea.vmem [#allocation1], 1
        %275 = vst [vmem:[%s274] ss:$2 sm:$0xff] %v270
        %s276 = scalar_lea.vmem [#allocation1], 17
        %277 = vst [vmem:[%s276] ss:$2 sm:$0xff] %v271
        %v278 = vld.sshfl [vmem:[#allocation1] sm:$0xff pattern:$0x75316420]
        %v279 = vld.sshfl [vmem:[#allocation1 + $0x8] sm:$0xff pattern:$0x75316420]
        %v280 = vld.sshfl [vmem:[#allocation1 + $0x10] sm:$0xff pattern:$0x75316420]
        %281 = vrot.lane.b32.xlu0 %v278, 16
        %v282 = vpop.permute.xlu0 %281
        %283 = vrot.lane.b32.xlu0 %v279, 16
        %v284 = vpop.permute.xlu0 %283
        %285 = vrot.lane.b32.xlu0 %v280, 16
        %v286 = vpop.permute.xlu0 %285
        %vm287 = vcmask 130048
        %v288 = vsel %vm287, %v282, %v284
        %v289 = vsel %vm287, %v284, %v286
        %292 = vst [vmem:[#allocation3] sm:$0xf0] %v288
        %293 = vst [vmem:[#allocation3 + $0x8] sm:$0xf0] %v289
        %v294 = vld [vmem:[#allocation2] sm:$0xff]
        %v295 = vld [vmem:[#allocation2 + $0x8] sm:$0xf]
        %vm296 = vcmp.lt.s32.totalorder %v238, 15
        %v297 = vsel %vm296, 1, 0
        %v298 = vperm.slane %v297, 0
        %v299 = vperm.slane %v297, 1
        %vm300 = vcmp.eq.s32.totalorder %v298, 1
        %vm301 = vcmp.eq.s32.totalorder %v299, 1
        %304 = vst [vmem:[#allocation1] ss:$2 sm:$0xff] %v294
        %s305 = scalar_lea.vmem [#allocation1], 16
        %306 = vst [vmem:[%s305] ss:$2 sm:$0xff] %v295
        %v307 = vld.sshfl [vmem:[#allocation1] sm:$0xff pattern:$0x75316420]
        %v308 = vld.sshfl [vmem:[#allocation1 + $0x8] sm:$0xff pattern:$0x75316420]
        %v309 = vld.sshfl [vmem:[#allocation1 + $0x10] sm:$0xff pattern:$0x75316420]
        %310 = vrot.lane.b32.xlu0 %v307, 15
        %v311 = vpop.permute.xlu0 %310
        %312 = vrot.lane.b32.xlu0 %v308, 15
        %v313 = vpop.permute.xlu0 %312
        %314 = vrot.lane.b32.xlu0 %v309, 15
        %v315 = vpop.permute.xlu0 %314
        %vm316 = vcmask 121856
        %v317 = vsel %vm316, %v311, %v313
        %v318 = vsel %vm316, %v313, %v315
        %v321 = vsel %vm300, %v317, 0.0
        %v322 = vsel %vm301, %v318, 0.0
        %323 = vst [vmem:[#allocation3 + $0x10] sm:$0xf] %v321
        %324 = vst [vmem:[#allocation3 + $0x18] sm:$0xf] %v322
        %v325 = vld [vmem:[#allocation2] sm:$0xff]
        %v326 = vld [vmem:[#allocation2 + $0x8] sm:$0xf]
        %329 = vst [vmem:[#allocation1] ss:$2 sm:$0xff] %v325
        %s330 = scalar_lea.vmem [#allocation1], 16
        %331 = vst [vmem:[%s330] ss:$2 sm:$0xff] %v326
        %v332 = vld.sshfl [vmem:[#allocation1] sm:$0xff pattern:$0x75316420]
        %v333 = vld.sshfl [vmem:[#allocation1 + $0x8] sm:$0xff pattern:$0x75316420]
        %v334 = vld.sshfl [vmem:[#allocation1 + $0x10] sm:$0xff pattern:$0x75316420]
        %335 = vrot.lane.b32.xlu0 %v332, 1
        %v336 = vpop.permute.xlu0 %335
        %337 = vrot.lane.b32.xlu0 %v333, 1
        %v338 = vpop.permute.xlu0 %337
        %339 = vrot.lane.b32.xlu0 %v334, 1
        %v340 = vpop.permute.xlu0 %339
        %vm341 = vcmask 7168
        %v342 = vsel %vm341, %v336, %v338
        %v343 = vsel %vm341, %v338, %v340
        %v346 = vsel %vm245, %v342, 0.0
        %v347 = vsel %vm246, %v343, 0.0
        %v350 = vrot.slane %v346, 4
        %v351 = vrot.slane %v347, 4
        %354 = vst [vmem:[#allocation3 + $0x10] sm:$0xf0] %v350
        %355 = vst [vmem:[#allocation3 + $0x18] sm:$0xf0] %v351
        %v356 = vld [vmem:[#allocation2 + $0x4] sm:$0xff]
        %358 = vst [vmem:[#allocation1] ss:$2 sm:$0xff] %v356
        %v359 = vld.sshfl [vmem:[#allocation1] sm:$0xff pattern:$0x75316420]
        %v360 = vld.sshfl [vmem:[#allocation1 + $0x8] sm:$0xff pattern:$0x75316420]
        %363 = vst [vmem:[#allocation3 + $0x20] sm:$0xf] %v359
        %364 = vst [vmem:[#allocation3 + $0x28] sm:$0xf] %v360
        %v365 = vld [vmem:[#allocation2 + $0x4] sm:$0xff]
        %v366 = vld [vmem:[#allocation2 + $0xc] sm:$0xf]
        %369 = vst [vmem:[#allocation1] ss:$2 sm:$0xff] %v365
        %s370 = scalar_lea.vmem [#allocation1], 16
        %371 = vst [vmem:[%s370] ss:$2 sm:$0xff] %v366
        %v372 = vld.sshfl [vmem:[#allocation1] sm:$0xff pattern:$0x75316420]
        %v373 = vld.sshfl [vmem:[#allocation1 + $0x8] sm:$0xff pattern:$0x75316420]
        %v374 = vld.sshfl [vmem:[#allocation1 + $0x10] sm:$0xff pattern:$0x75316420]
        %375 = vrot.lane.b32.xlu0 %v372, 127
        %v376 = vpop.permute.xlu0 %375
        %377 = vrot.lane.b32.xlu0 %v373, 127
        %v378 = vpop.permute.xlu0 %377
        %379 = vrot.lane.b32.xlu0 %v374, 127
        %v380 = vpop.permute.xlu0 %379
        %vm381 = vcmask 1039360
        %v382 = vsel %vm381, %v376, %v378
        %v383 = vsel %vm381, %v378, %v380
        %v386 = vsel %vm300, %v382, 0.0
        %v387 = vsel %vm301, %v383, 0.0
        %v390 = vrot.slane %v386, 4
        %v391 = vrot.slane %v387, 4
        %394 = vst [vmem:[#allocation3 + $0x20] sm:$0xf0] %v390
        %395 = vst [vmem:[#allocation3 + $0x28] sm:$0xf0] %v391
        %v396 = vld [vmem:[#allocation2 + $0x4] sm:$0xff]
        %v397 = vld [vmem:[#allocation2 + $0xc] sm:$0xf]
        %400 = vst [vmem:[#allocation1] ss:$2 sm:$0xff] %v396
        %s401 = scalar_lea.vmem [#allocation1], 16
        %402 = vst [vmem:[%s401] ss:$2 sm:$0xff] %v397
        %v403 = vld.sshfl [vmem:[#allocation1] sm:$0xff pattern:$0x75316420]
        %v404 = vld.sshfl [vmem:[#allocation1 + $0x8] sm:$0xff pattern:$0x75316420]
        %v405 = vld.sshfl [vmem:[#allocation1 + $0x10] sm:$0xff pattern:$0x75316420]
        %406 = vrot.lane.b32.xlu0 %v403, 113
        %v407 = vpop.permute.xlu0 %406
        %408 = vrot.lane.b32.xlu0 %v404, 113
        %v409 = vpop.permute.xlu0 %408
        %410 = vrot.lane.b32.xlu0 %v405, 113
        %v411 = vpop.permute.xlu0 %410
        %vm412 = vcmask 924672
        %v413 = vsel %vm412, %v407, %v409
        %v414 = vsel %vm412, %v409, %v411
        %v417 = vsel %vm245, %v413, 0.0
        %v418 = vsel %vm246, %v414, 0.0
        %419 = vst [vmem:[#allocation3 + $0x30] sm:$0xf] %v417
        %420 = vst [vmem:[#allocation3 + $0x38] sm:$0xf] %v418
        %v421 = vld [vmem:[#allocation2 + $0x4] sm:$0xff]
        %v422 = vld [vmem:[#allocation2 + $0xc] sm:$0xf]
        %s425 = scalar_lea.vmem [#allocation1], 1
        %426 = vst [vmem:[%s425] ss:$2 sm:$0xff] %v421
        %s427 = scalar_lea.vmem [#allocation1], 17
        %428 = vst [vmem:[%s427] ss:$2 sm:$0xff] %v422
        %v429 = vld.sshfl [vmem:[#allocation1] sm:$0xff pattern:$0x75316420]
        %v430 = vld.sshfl [vmem:[#allocation1 + $0x8] sm:$0xff pattern:$0x75316420]
        %v431 = vld.sshfl [vmem:[#allocation1 + $0x10] sm:$0xff pattern:$0x75316420]
        %432 = vrot.lane.b32.xlu0 %v429, 112
        %v433 = vpop.permute.xlu0 %432
        %434 = vrot.lane.b32.xlu0 %v430, 112
        %v435 = vpop.permute.xlu0 %434
        %436 = vrot.lane.b32.xlu0 %v431, 112
        %v437 = vpop.permute.xlu0 %436
        %vm438 = vcmask 916480
        %v439 = vsel %vm438, %v433, %v435
        %v440 = vsel %vm438, %v435, %v437
        %443 = vst [vmem:[#allocation3 + $0x30] sm:$0xf0] %v439
        %444 = vst [vmem:[#allocation3 + $0x38] sm:$0xf0] %v440
        %v445 = vld [vmem:[#allocation2 + $0x4] sm:$0xff]
        %v446 = vld [vmem:[#allocation2 + $0xc] sm:$0xf]
        %449 = vst [vmem:[#allocation1] ss:$2 sm:$0xff] %v445
        %s450 = scalar_lea.vmem [#allocation1], 16
        %451 = vst [vmem:[%s450] ss:$2 sm:$0xff] %v446
        %v452 = vld.sshfl [vmem:[#allocation1] sm:$0xff pattern:$0x75316420]
        %v453 = vld.sshfl [vmem:[#allocation1 + $0x8] sm:$0xff pattern:$0x75316420]
        %v454 = vld.sshfl [vmem:[#allocation1 + $0x10] sm:$0xff pattern:$0x75316420]
        %455 = vrot.lane.b32.xlu0 %v452, 111
        %v456 = vpop.permute.xlu0 %455
        %457 = vrot.lane.b32.xlu0 %v453, 111
        %v458 = vpop.permute.xlu0 %457
        %459 = vrot.lane.b32.xlu0 %v454, 111
        %v460 = vpop.permute.xlu0 %459
        %vm461 = vcmask 908288
        %v462 = vsel %vm461, %v456, %v458
        %v463 = vsel %vm461, %v458, %v460
        %v466 = vsel %vm300, %v462, 0.0
        %v467 = vsel %vm301, %v463, 0.0
        %468 = vst [vmem:[#allocation3 + $0x40] sm:$0xf] %v466
        %469 = vst [vmem:[#allocation3 + $0x48] sm:$0xf] %v467
        %v470 = vld [vmem:[%s1] sm:$0xff]
        %v471 = vld [vmem:[#allocation3] sm:$0xff]
        %v472 = vld [vmem:[#allocation3 + $0x8] sm:$0xff]
        %v473 = vld [vmem:[#allocation3 + $0x10] sm:$0xff]
        %v474 = vld [vmem:[#allocation3 + $0x18] sm:$0xff]
        %v475 = vld [vmem:[#allocation3 + $0x20] sm:$0xff]
        %v476 = vld [vmem:[#allocation3 + $0x28] sm:$0xff]
        %v477 = vld [vmem:[#allocation3 + $0x30] sm:$0xff]
        %v478 = vld [vmem:[#allocation3 + $0x38] sm:$0xff]
        %v479 = vld [vmem:[#allocation3 + $0x40] sm:$0xf]
        %v480 = vld [vmem:[#allocation3 + $0x48] sm:$0xf]
        %v481 = vld [vmem:[%s2] sm:$0xff]
        %483 = vset.pattern.permute.xlu0 0
        %484 = vperm.xlu0 %483, %v481
        %v485 = vpop.permute.xlu0 %484
        %vm487 = vcmask 293888
        %v489 = vsel %vm487, %v470, 0
        %v492 = vsel %vm232, %v479, 0
        %v495 = vsel %vm232, %v480, 0
        %497 = vmatpush.msra.mxu0 0.0
        %498 = vmatpush.msra.mxu0 0.0
        %499 = vmatpush.msra.mxu0 0.0
        %500 = vmatpush.msra.mxu0 0.0
        %501 = vmatpush.msra.mxu0 0.0
        %502 = vmatpush.msra.mxu0 0.0
        %503 = vmatpush.msra.mxu0 0.0
        %504 = vmatpush.msra.mxu0 0.0
        %505 = vmatpush.msra.mxu0 0.0
        %506 = vmatpush.msra.mxu0 0.0
        %507 = vmatpush.msra.mxu0 0.0
        %508 = vmatpush.msra.mxu0 %v492
        %509 = vmatpush.msra.mxu0 %v477
        %510 = vmatpush.msra.mxu0 %v475
        %511 = vmatpush.msra.mxu0 %v473
        %512 = vmatpush.msra.mxu0 %v471
        %513 = vmatmul.f32.gmra.mxu0 %v489
        %v514 = vpop.f32.mrf.mxu0
        %v515 = vadd.f32 %v485, %v514
        %516 = vdwg.mxu0
        %517 = vmatpush.msra.mxu0 0.0
        %518 = vmatpush.msra.mxu0 0.0
        %519 = vmatpush.msra.mxu0 0.0
        %520 = vmatpush.msra.mxu0 0.0
        %521 = vmatpush.msra.mxu0 0.0
        %522 = vmatpush.msra.mxu0 0.0
        %523 = vmatpush.msra.mxu0 0.0
        %524 = vmatpush.msra.mxu0 0.0
        %525 = vmatpush.msra.mxu0 0.0
        %526 = vmatpush.msra.mxu0 0.0
        %527 = vmatpush.msra.mxu0 0.0
        %528 = vmatpush.msra.mxu0 %v495
        %529 = vmatpush.msra.mxu0 %v478
        %530 = vmatpush.msra.mxu0 %v476
        %531 = vmatpush.msra.mxu0 %v474
        %532 = vmatpush.msra.mxu0 %v472
        %533 = vmatmul.f32.gmra.mxu0 %v489
        %v534 = vpop.f32.mrf.mxu0
        %v535 = vadd.f32 %v485, %v534
        %536 = vdwg.mxu0
        %vm537 = vcmp.ge.f32.partialorder %v515, 0.0
        %vm538 = vcmp.ge.f32.partialorder %v535, 0.0
        %v539 = vmul.f32 %v515, 0.1
        %v540 = vmul.f32 %v535, 0.1
        %v541 = vsel %vm537, %v515, %v539
        %v542 = vsel %vm538, %v535, %v540
        %543 = vst [vmem:[%s230] sm:$0xff] %v541
        %544 = vst [vmem:[%s230 + $0x8] sm:$0xff] %v542
        %s545 = sand.u32 %s119, 1
        %s546 = scalar_lea.sflag [#allocation6], %s545
        %s547 = sand.u32 %s119, 1
        %s548 = smul.addr %s547, 16
        %s549 = scalar_lea.vmem [#allocation9], %s548
        // Predicated region
        $region45: #{tpu_custom_call.1} parent=35 // pred_check
          %p550 = pneg %p129
        $region46: #{tpu_custom_call.1} parent=35 // pred_check_branch
          %552 = sbr.rel (%p550) target = $region48
        $region47: #{tpu_custom_call.1} parent=35 // pred_region
          %554 = vsyncadd %s546, 0
          %s555 = smul.addr %s22, 2
          %s556 = smul.addr %s555, 8
          %s557 = scalar_lea.hbm %s4, %s556
          %s559 = sshll.u32 %s549, 4
          %s560 = int_to_ptr.vmem [resolvable:$true] %s559
          %s561 = sshll.u32 %s557, 4
          %s562 = int_to_ptr.hbm [resolvable:$true] %s561
          %564 = dma.vmem_to_hbm [thread:$0]  %s560, 256, %s562, %s546
        $region48: #{tpu_custom_call.1} parent=35 // pred_fallthru
          _
      $region36: #{tpu_custom_call.1} parent=5 // pred_fallthru
        _
      %p565 = scmp.le.s32.totalorder 2, %s17
      // Predicated region
      $region49: #{tpu_custom_call.1} parent=5 // pred_check
        %p566 = pneg %p565
      $region50: #{tpu_custom_call.1} parent=5 // pred_check_branch
        %568 = sbr.rel (%p566) target = $region52
      $region51: #{tpu_custom_call.1} parent=5 // pred_region
        %s569 = ssub.s32 %s17, 2
        // Predicated region
        $region53: #{tpu_custom_call.1} parent=51 // pred_check
          %p570 = pneg %p135
        $region54: #{tpu_custom_call.1} parent=51 // pred_check_branch
          %572 = sbr.rel (%p570) target = $region56
        $region55: #{tpu_custom_call.1} parent=51 // pred_region
          %s573 = sand.u32 %s120, 1
          %s574 = scalar_lea.sflag [#allocation6], %s573
          %s575 = sand.u32 %s120, 1
          %s576 = smul.addr %s575, 16
          %s577 = scalar_lea.vmem [#allocation9], %s576
          %579 = dma.done %s574, 256
        $region56: #{tpu_custom_call.1} parent=51 // pred_fallthru
          _
      $region52: #{tpu_custom_call.1} parent=5 // pred_fallthru
        _
    $region6: #{tpu_custom_call.1} parent=1 // loop_footer
      %s21 = sadd.s32 1, %s17
    $region7: #{tpu_custom_call.1} parent=1 // loop_footer_branch
      %16 = sbr.rel target = $region3
    $region8: #{tpu_custom_call.1} parent=1 // loop_exit
      _
    %580 = vsyncpa [#allocation5], 1
    %s581 = scalar_lea.sflag [#allocation5], 1
    %582 = vsyncpa %s581, 1
    %583 = vsyncpa [#allocation8], 1
    %584 = vsyncpa [#allocation6], 1
    %s585 = scalar_lea.sflag [#allocation6], 1
    %586 = vsyncpa %s585, 1

</llo_original>
